<compile_context>
chip_gen: v7x
topology: tpu7x:2x2x1
jax: 0.10.0
libtpu: 0.0.40
codegen_flags: <defaults>
</compile_context>

<pallas_src>
import jax
import jax.numpy as jnp
from jax import lax
from jax.experimental import pallas as pl
from jax.experimental.pallas import tpu as pltpu

NEG_SLOPE_ATT = 0.2    # PyG GATConv attention leaky_relu slope (default)
NEG_SLOPE_ACT = 0.01   # F.leaky_relu default slope (applied after each HeteroConv)


# ----------------------------------------------------------------------------
# Block-diagonal attention matrices (built once at parameter-init / trace time)
# ----------------------------------------------------------------------------
def _att_block_diag_rows(att):
    # [H, C] -> [H, H*C]; row h holds att[h] in columns h*C:(h+1)*C  (source-side logits)
    h, c = att.shape
    eye = jnp.eye(h, dtype=att.dtype)
    return (eye[:, :, None] * att[None, :, :]).reshape(h, h * c)


def _att_block_diag_cols(att):
    # [H, C] -> [H*C, H]; column h holds att[h] in rows h*C:(h+1)*C  (dest-side logits)
    h, c = att.shape
    eye = jnp.eye(h, dtype=att.dtype)
    return (att[:, :, None] * eye[:, None, :]).reshape(h * c, h)


def _pick_dst_tile(nd):
    # Largest dst tile (multiple of 8) that divides Nd, capped so VMEM stays comfortable
    # even on v7x (64 MiB physical); small graphs use the whole array (grid of 1).
    if nd <= 512:
        return nd
    for t in (512, 256, 128, 64, 32, 16, 8):
        if nd % t == 0:
            return t
    return nd


# ----------------------------------------------------------------------------
# Fused kernel factory: all GATConvs feeding one dst node type + sum + leaky_relu
# (+ optionally the shared output Linear on the last layer).
# ----------------------------------------------------------------------------
def _make_layer_kernel(edge_cfgs, heads, head_dim, with_linear):
    H, C = heads, head_dim

    def kernel(*refs):
        it = iter(refs)
        x_dst = next(it)[...]                                # [Td, Fin] (dst tile)

        edge_data = []
        for cfg in edge_cfgs:
            x_src = next(it)[...]                            # [Ns, Fin] (full)
            w_src = next(it)[...]                            # [Fin, H*C]
            w_dst = w_src if cfg["shared_w"] else next(it)[...]
            a_src = next(it)[...]                            # [H, H*C]  (block-diag rows)
            a_dst = next(it)[...]                            # [H*C, H]  (block-diag cols)
            bias = next(it)[...]                             # [1, H*C]
            adj = next(it)[...]                              # [Td, Ns] int8
            edge_data.append((x_src, w_src, w_dst, a_src, a_dst, bias, adj, cfg))

        if with_linear:
            lin_w = next(it)[...]                            # [H*C, OUT]
            lin_b = next(it)[...]                            # [1, OUT]

        hidden_ref = next(it)                                # [Td, H*C]
        final_ref = next(it) if with_linear else None        # [Td, OUT]

        acc = None
        for (x_src, w_src, w_dst, a_src, a_dst, bias, adj, cfg) in edge_data:
            # projections (MXU)
            hs = jnp.dot(x_src, w_src, preferred_element_type=jnp.float32)       # [Ns, H*C]
            if cfg["reuse_hs_as_hd"]:
                hd = hs                                                            # same nodes & weights
            else:
                hd = jnp.dot(x_dst, w_dst, preferred_element_type=jnp.float32)    # [Td, H*C]

            # batched per-head attention logits: two matmuls instead of 2*H tiny ones
            a_d = jnp.dot(hd, a_dst, preferred_element_type=jnp.float32)          # [Td, H]
            a_s_t = lax.dot_general(a_src, hs, (((1,), (1,)), ((), ())),
                                    preferred_element_type=jnp.float32)           # [H, Ns]

            # mask terms hoisted out of the head loop
            adj_f = adj.astype(jnp.float32)
            mask_f = jnp.where(adj_f > 0.0, 1.0, 0.0)                             # [Td, Ns]
            mask_bias = (mask_f - 1.0) * 1e30                                     # 0 / -1e30
            row_valid = jnp.max(mask_f, axis=1, keepdims=True)                    # [Td, 1]

            head_outs = []
            for h in range(H):                                                    # static unroll
                logit = a_d[:, h:h + 1] + a_s_t[h:h + 1, :]                       # [Td, Ns]
                logit = jnp.where(logit > 0, logit, NEG_SLOPE_ATT * logit)        # attention leaky_relu
                e = logit + mask_bias
                m = jnp.max(e, axis=1, keepdims=True)                             # [Td, 1]
                p = jnp.exp(e - m)                                                # masked -> exactly 0
                denom = jnp.sum(p, axis=1, keepdims=True)                         # >= 1
                # 1/denom on the EUP; rows with no edges zeroed (-> output = bias, PyG behavior)
                scale = pl.reciprocal(denom, approx=True) * row_valid             # [Td, 1]
                hs_h = hs[:, h * C:(h + 1) * C]                                   # [Ns, C]
                out_h = jnp.dot(p.astype(jnp.bfloat16), hs_h.astype(jnp.bfloat16),
                                preferred_element_type=jnp.float32) * scale       # [Td, C]
                head_outs.append(out_h)

            conv_out = jnp.concatenate(head_outs, axis=1) + bias                  # [Td, H*C]
            acc = conv_out if acc is None else acc + conv_out                     # HeteroConv aggr='sum'

        act = jnp.where(acc > 0, acc, NEG_SLOPE_ACT * acc)                        # F.leaky_relu
        hidden_ref[...] = act                                                      # single lane-dense store
        if with_linear:
            final_ref[...] = jnp.dot(act, lin_w, preferred_element_type=jnp.float32) + lin_b

    return kernel


def hetero_gat_layer(x_dst, edge_inputs, heads, head_dim, lin=None):
    """One fused HeteroConv step for a single dst node type.

    edge_inputs: list of dicts with keys x_src, adj (int8 [Nd,Ns]), w_src, w_dst,
                 a_src_bd ([H,H*C]), a_dst_bd ([H*C,H]), bias ([1,H*C]).
    lin: optional (lin_w [H*C,OUT], lin_b [1,OUT]) -> also emit the shared output Linear.
    Returns (hidden [Nd,H*C], final [Nd,OUT] or None).
    """
    nd, fin = x_dst.shape
    hc = heads * head_dim
    tile = _pick_dst_tile(nd)
    assert nd % tile == 0
    n_tiles = nd // tile
    with_linear = lin is not None

    full = lambda i: (0, 0)
    tiled = lambda i: (i, 0)

    inputs = [x_dst]
    in_specs = [pl.BlockSpec((tile, fin), tiled)]
    edge_cfgs = []
    for e in edge_inputs:
        x_src, adj = e["x_src"], e["adj"]
        w_src, w_dst = e["w_src"], e["w_dst"]
        shared_w = w_dst is w_src
        reuse = shared_w and (x_src is x_dst) and (n_tiles == 1)
        edge_cfgs.append({"shared_w": shared_w, "reuse_hs_as_hd": reuse})

        ns = x_src.shape[0]
        inputs.append(x_src); in_specs.append(pl.BlockSpec((ns, fin), full))
        inputs.append(w_src); in_specs.append(pl.BlockSpec(w_src.shape, full))
        if not shared_w:
            inputs.append(w_dst); in_specs.append(pl.BlockSpec(w_dst.shape, full))
        inputs.append(e["a_src_bd"]); in_specs.append(pl.BlockSpec((heads, hc), full))
        inputs.append(e["a_dst_bd"]); in_specs.append(pl.BlockSpec((hc, heads), full))
        inputs.append(e["bias"]); in_specs.append(pl.BlockSpec((1, hc), full))
        inputs.append(adj); in_specs.append(pl.BlockSpec((tile, ns), tiled))

    if with_linear:
        lin_w, lin_b = lin
        out_ch = lin_w.shape[1]
        inputs.append(lin_w); in_specs.append(pl.BlockSpec(lin_w.shape, full))
        inputs.append(lin_b); in_specs.append(pl.BlockSpec((1, out_ch), full))
        out_shape = (jax.ShapeDtypeStruct((nd, hc), jnp.float32),
                     jax.ShapeDtypeStruct((nd, out_ch), jnp.float32))
        out_specs = (pl.BlockSpec((tile, hc), tiled),
                     pl.BlockSpec((tile, out_ch), tiled))
    else:
        out_shape = jax.ShapeDtypeStruct((nd, hc), jnp.float32)
        out_specs = pl.BlockSpec((tile, hc), tiled)

    kernel = _make_layer_kernel(edge_cfgs, heads, head_dim, with_linear)
    result = pl.pallas_call(
        kernel,
        out_shape=out_shape,
        grid=(n_tiles,),
        in_specs=in_specs,
        out_specs=out_specs,
        compiler_params=pltpu.CompilerParams(
            dimension_semantics=("parallel",),
            vmem_limit_bytes=64 * 1024 * 1024),
    )(*inputs)

    if with_linear:
        hidden, final = result
        return hidden, final
    return result, None


# ----------------------------------------------------------------------------
# HGAT forward (glue in plain JAX, compute in the fused Pallas kernel above)
# ----------------------------------------------------------------------------
def hgat_forward(node_ids, embed_tables, adjs, conv_params, out_w, out_b,
                 node_types, edge_types, node_types_to_embed):
    # nn.Embedding lookup (pure gather — plain JAX glue)
    x_dict = {nt: jnp.take(embed_tables[nt], node_ids[nt], axis=0)
              for nt in node_types}

    num_layers = len(conv_params)
    final_embeddings = {}
    for l, layer_params in enumerate(conv_params):
        is_last = (l == num_layers - 1)
        by_dst = {}
        for et in edge_types:
            src_t, _, dst_t = et
            if src_t in x_dict and dst_t in x_dict:
                by_dst.setdefault(dst_t, []).append(et)

        new_x = {}
        for dst_t, ets in by_dst.items():
            edge_inputs = []
            for et in ets:
                w_src, w_dst, a_src_bd, a_dst_bd, bias = layer_params[et]
                edge_inputs.append(dict(
                    x_src=x_dict[et[0]], adj=adjs[et],
                    w_src=w_src, w_dst=w_dst,
                    a_src_bd=a_src_bd, a_dst_bd=a_dst_bd, bias=bias))
            heads = edge_inputs[0]["a_dst_bd"].shape[1]
            head_dim = edge_inputs[0]["a_dst_bd"].shape[0] // heads
            lin = (out_w, out_b) if (is_last and dst_t in node_types_to_embed) else None
            hidden, final = hetero_gat_layer(x_dict[dst_t], edge_inputs,
                                             heads, head_dim, lin=lin)
            new_x[dst_t] = hidden
            if final is not None:
                final_embeddings[dst_t] = final
        # node types with no incoming edge types drop out (PyG HeteroConv behavior)
        x_dict = new_x

    return final_embeddings, x_dict


# ----------------------------------------------------------------------------
# Deterministic parameter / graph construction
# ----------------------------------------------------------------------------
def make_adj(key, n_dst, n_src, num_edges):
    ks, kd = jax.random.split(key)
    src = jax.random.randint(ks, (num_edges,), 0, n_src)
    dst = jax.random.randint(kd, (num_edges,), 0, n_dst)
    # int8 adjacency: 4x less HBM/VMEM traffic than f32; .set collapses duplicate edges
    return jnp.zeros((n_dst, n_src), jnp.int8).at[dst, src].set(1)


def init_params(key, node_types, num_nodes, edge_types,
                emb_dim, hidden, heads, out_ch, num_layers):
    scale = 0.1
    hc = hidden * heads
    k_emb, k_conv, k_lin = jax.random.split(key, 3)

    embed = {}
    for i, nt in enumerate(node_types):
        embed[nt] = scale * jax.random.normal(
            jax.random.fold_in(k_emb, i), (num_nodes[nt], emb_dim), jnp.float32)

    conv_params = []
    for l in range(num_layers):
        lp = {}
        in_dim = emb_dim if l == 0 else hc
        for j, et in enumerate(edge_types):
            kk = jax.random.fold_in(jax.random.fold_in(k_conv, l), j)
            k1, k2, k3, k4 = jax.random.split(kk, 4)
            w_src = scale * jax.random.normal(k1, (in_dim, hc), jnp.float32)
            if l == 0:
                # GATConv((-1, -1), ...): separate lin_src / lin_dst
                w_dst = scale * jax.random.normal(k2, (in_dim, hc), jnp.float32)
            else:
                # GATConv(int, ...): single shared lin for src and dst (same array object)
                w_dst = w_src
            att_src = scale * jax.random.normal(k3, (heads, hidden), jnp.float32)
            att_dst = scale * jax.random.normal(k4, (heads, hidden), jnp.float32)
            # block-diagonal attention matrices built once here (trace time), so the
            # kernel issues one matmul per side instead of 2*heads tiny dot products
            a_src_bd = _att_block_diag_rows(att_src)   # [H, H*C]
            a_dst_bd = _att_block_diag_cols(att_dst)   # [H*C, H]
            bias = jnp.zeros((1, hc), jnp.float32)
            lp[et] = (w_src, w_dst, a_src_bd, a_dst_bd, bias)
        conv_params.append(lp)

    k_w, k_b = jax.random.split(k_lin)
    out_w = scale * jax.random.normal(k_w, (hc, out_ch), jnp.float32)
    out_b = scale * jax.random.normal(k_b, (1, out_ch), jnp.float32)
    # TODO(synk): self.lin in the PyTorch module is initialized but never used in forward(); omitted.
    return embed, conv_params, out_w, out_b


if __name__ == "__main__":
    # Small synthetic heterogeneous graph (node counts are multiples of 8 for sublane alignment)
    node_types = ["user", "item"]
    num_nodes = {"user": 16, "item": 16}
    edge_types = [("user", "rates", "item"),
                  ("item", "rev_rates", "user"),
                  ("user", "follows", "user")]
    node_types_to_embed = ["user", "item"]

    embedding_dim = 32
    hidden_channels = 8
    num_heads = 4
    out_channels = 16
    num_layers = 2

    key = jax.random.PRNGKey(0)
    k_graph, k_params = jax.random.split(key)

    adjs = {}
    for j, (src_t, rel, dst_t) in enumerate(edge_types):
        adjs[(src_t, rel, dst_t)] = make_adj(
            jax.random.fold_in(k_graph, j),
            num_nodes[dst_t], num_nodes[src_t], num_edges=48)

    node_ids = {nt: jnp.arange(num_nodes[nt], dtype=jnp.int32) for nt in node_types}

    embed, conv_params, out_w, out_b = init_params(
        k_params, node_types, num_nodes, edge_types,
        embedding_dim, hidden_channels, num_heads, out_channels, num_layers)

    final_embeddings, x_dict = hgat_forward(
        node_ids, embed, adjs, conv_params, out_w, out_b,
        node_types, edge_types, node_types_to_embed)

    jax.block_until_ready((final_embeddings, x_dict))

    # sanity: shapes and finiteness
    assert final_embeddings["user"].shape == (16, out_channels)
    assert final_embeddings["item"].shape == (16, out_channels)
    assert x_dict["user"].shape == (16, hidden_channels * num_heads)
    assert x_dict["item"].shape == (16, hidden_channels * num_heads)
    assert bool(jnp.all(jnp.isfinite(final_embeddings["user"])))
    assert bool(jnp.all(jnp.isfinite(final_embeddings["item"])))

    print("KERNEL_OK")
</pallas_src>

<mosaic_0001>
module attributes {stable_mosaic.version = 11 : i64} {
  func.func @kernel(%arg0: i32, %arg1: memref<16x32xf32, #tpu.memory_space<vmem>>, %arg2: memref<16x32xf32, #tpu.memory_space<vmem>>, %arg3: memref<32x32xf32, #tpu.memory_space<vmem>>, %arg4: memref<32x32xf32, #tpu.memory_space<vmem>>, %arg5: memref<4x32xf32, #tpu.memory_space<vmem>>, %arg6: memref<32x4xf32, #tpu.memory_space<vmem>>, %arg7: memref<1x32xf32, #tpu.memory_space<vmem>>, %arg8: memref<16x16xi8, #tpu.memory_space<vmem>>, %arg9: memref<16x32xf32, #tpu.memory_space<vmem>>) attributes {dimension_semantics = [#tpu.dimension_semantics<parallel>], iteration_bounds = array<i64: 1>, scalar_prefetch = 0 : i64, scratch_operands = 0 : i64, tpu.core_type = #tpu.core_type<tc>, window_params = [{transform_indices = @transform_0, window_bounds = array<i64: 16, 32>}, {pipeline_mode = #tpu.pipeline_mode<synchronous>, transform_indices = @transform_1, window_bounds = array<i64: 16, 32>}, {pipeline_mode = #tpu.pipeline_mode<synchronous>, transform_indices = @transform_2, window_bounds = array<i64: 32, 32>}, {pipeline_mode = #tpu.pipeline_mode<synchronous>, transform_indices = @transform_3, window_bounds = array<i64: 32, 32>}, {pipeline_mode = #tpu.pipeline_mode<synchronous>, transform_indices = @transform_4, window_bounds = array<i64: 4, 32>}, {pipeline_mode = #tpu.pipeline_mode<synchronous>, transform_indices = @transform_5, window_bounds = array<i64: 32, 4>}, {pipeline_mode = #tpu.pipeline_mode<synchronous>, transform_indices = @transform_6, window_bounds = array<i64: 1, 32>}, {transform_indices = @transform_7, window_bounds = array<i64: 16, 16>}, {transform_indices = @transform_8, window_bounds = array<i64: 16, 32>}]} {
    %c0 = arith.constant 0 : index
    %c0_0 = arith.constant 0 : index
    %0 = vector.load %arg1[%c0, %c0_0] : memref<16x32xf32, #tpu.memory_space<vmem>>, vector<16x32xf32>
    %c0_1 = arith.constant 0 : index
    %c0_2 = arith.constant 0 : index
    %1 = vector.load %arg2[%c0_1, %c0_2] : memref<16x32xf32, #tpu.memory_space<vmem>>, vector<16x32xf32>
    %c0_3 = arith.constant 0 : index
    %c0_4 = arith.constant 0 : index
    %2 = vector.load %arg3[%c0_3, %c0_4] : memref<32x32xf32, #tpu.memory_space<vmem>>, vector<32x32xf32>
    %c0_5 = arith.constant 0 : index
    %c0_6 = arith.constant 0 : index
    %3 = vector.load %arg4[%c0_5, %c0_6] : memref<32x32xf32, #tpu.memory_space<vmem>>, vector<32x32xf32>
    %c0_7 = arith.constant 0 : index
    %c0_8 = arith.constant 0 : index
    %4 = vector.load %arg5[%c0_7, %c0_8] : memref<4x32xf32, #tpu.memory_space<vmem>>, vector<4x32xf32>
    %c0_9 = arith.constant 0 : index
    %c0_10 = arith.constant 0 : index
    %5 = vector.load %arg6[%c0_9, %c0_10] : memref<32x4xf32, #tpu.memory_space<vmem>>, vector<32x4xf32>
    %c0_11 = arith.constant 0 : index
    %c0_12 = arith.constant 0 : index
    %6 = vector.load %arg7[%c0_11, %c0_12] : memref<1x32xf32, #tpu.memory_space<vmem>>, vector<1x32xf32>
    %c0_13 = arith.constant 0 : index
    %c0_14 = arith.constant 0 : index
    %7 = vector.load %arg8[%c0_13, %c0_14] : memref<16x16xi8, #tpu.memory_space<vmem>>, vector<16x16xi8>
    %cst = arith.constant dense<0.000000e+00> : vector<16x32xf32>
    %8 = tpu.matmul %1, %2, %cst {dimension_numbers = #tpu.dot_dimension_numbers<[1], [0], [0], [1], [0, 0, 1, 1], [], []>} : vector<16x32xf32>, vector<32x32xf32>, vector<16x32xf32> -> vector<16x32xf32>
    %cst_15 = arith.constant dense<0.000000e+00> : vector<16x32xf32>
    %9 = tpu.matmul %0, %3, %cst_15 {dimension_numbers = #tpu.dot_dimension_numbers<[1], [0], [0], [1], [0, 0, 1, 1], [], []>} : vector<16x32xf32>, vector<32x32xf32>, vector<16x32xf32> -> vector<16x32xf32>
    %cst_16 = arith.constant dense<0.000000e+00> : vector<16x4xf32>
    %10 = tpu.matmul %9, %5, %cst_16 {dimension_numbers = #tpu.dot_dimension_numbers<[1], [0], [0], [1], [0, 0, 1, 1], [], []>} : vector<16x32xf32>, vector<32x4xf32>, vector<16x4xf32> -> vector<16x4xf32>
    %cst_17 = arith.constant dense<0.000000e+00> : vector<4x16xf32>
    %11 = tpu.matmul %4, %8, %cst_17 {dimension_numbers = #tpu.dot_dimension_numbers<[1], [1], [0], [0], [0, 0, 1, 0], [], []>} : vector<4x32xf32>, vector<16x32xf32>, vector<4x16xf32> -> vector<4x16xf32>
    %12 = arith.sitofp %7 : vector<16x16xi8> to vector<16x16xf32>
    %cst_18 = arith.constant 0.000000e+00 : f32
    %13 = vector.broadcast %cst_18 : f32 to vector<16x16xf32>
    %14 = arith.cmpf ogt, %12, %13 : vector<16x16xf32>
    %cst_19 = arith.constant 1.000000e+00 : f32
    %cst_20 = arith.constant 0.000000e+00 : f32
    %15 = vector.broadcast %cst_19 : f32 to vector<16x16xf32>
    %16 = vector.broadcast %cst_20 : f32 to vector<16x16xf32>
    %17 = arith.select %14, %15, %16 : vector<16x16xi1>, vector<16x16xf32>
    %cst_21 = arith.constant 1.000000e+00 : f32
    %18 = vector.broadcast %cst_21 : f32 to vector<16x16xf32>
    %19 = arith.subf %17, %18 : vector<16x16xf32>
    %cst_22 = arith.constant 1.000000e+30 : f32
    %20 = vector.broadcast %cst_22 : f32 to vector<16x16xf32>
    %21 = arith.mulf %19, %20 : vector<16x16xf32>
    %cst_23 = arith.constant dense<0xFF800000> : vector<16xf32>
    %22 = vector.multi_reduction <maximumf>, %17, %cst_23 [1] : vector<16x16xf32> to vector<16xf32>
    %23 = vector.shape_cast %22 : vector<16xf32> to vector<16x1xf32>
    %24 = vector.extract_strided_slice %10 {offsets = [0, 0], sizes = [16, 1], strides = [1, 1]} : vector<16x4xf32> to vector<16x1xf32>
    %25 = vector.extract_strided_slice %11 {offsets = [0, 0], sizes = [1, 16], strides = [1, 1]} : vector<4x16xf32> to vector<1x16xf32>
    %26 = vector.broadcast %24 : vector<16x1xf32> to vector<16x16xf32>
    %27 = vector.broadcast %25 : vector<1x16xf32> to vector<16x16xf32>
    %28 = arith.addf %26, %27 : vector<16x16xf32>
    %cst_24 = arith.constant 0.000000e+00 : f32
    %29 = vector.broadcast %cst_24 : f32 to vector<16x16xf32>
    %30 = arith.cmpf ogt, %28, %29 : vector<16x16xf32>
    %cst_25 = arith.constant 2.000000e-01 : f32
    %31 = vector.broadcast %cst_25 : f32 to vector<16x16xf32>
    %32 = arith.mulf %31, %28 : vector<16x16xf32>
    %33 = arith.select %30, %28, %32 : vector<16x16xi1>, vector<16x16xf32>
    %34 = arith.addf %33, %21 : vector<16x16xf32>
    %cst_26 = arith.constant dense<0xFF800000> : vector<16xf32>
    %35 = vector.multi_reduction <maximumf>, %34, %cst_26 [1] : vector<16x16xf32> to vector<16xf32>
    %36 = vector.shape_cast %35 : vector<16xf32> to vector<16x1xf32>
    %37 = vector.broadcast %36 : vector<16x1xf32> to vector<16x16xf32>
    %38 = arith.subf %34, %37 : vector<16x16xf32>
    %39 = math.exp %38 : vector<16x16xf32>
    %cst_27 = arith.constant dense<0.000000e+00> : vector<16xf32>
    %40 = vector.multi_reduction <add>, %39, %cst_27 [1] : vector<16x16xf32> to vector<16xf32>
    %41 = vector.shape_cast %40 : vector<16xf32> to vector<16x1xf32>
    %42 = tpu.reciprocal %41 {approx = true} : vector<16x1xf32> -> vector<16x1xf32>
    %43 = arith.mulf %42, %23 : vector<16x1xf32>
    %44 = vector.extract_strided_slice %8 {offsets = [0, 0], sizes = [16, 8], strides = [1, 1]} : vector<16x32xf32> to vector<16x8xf32>
    %45 = arith.truncf %39 : vector<16x16xf32> to vector<16x16xbf16>
    %46 = arith.truncf %44 : vector<16x8xf32> to vector<16x8xbf16>
    %cst_28 = arith.constant dense<0.000000e+00> : vector<16x8xf32>
    %47 = tpu.matmul %45, %46, %cst_28 {dimension_numbers = #tpu.dot_dimension_numbers<[1], [0], [0], [1], [0, 0, 1, 1], [], []>} : vector<16x16xbf16>, vector<16x8xbf16>, vector<16x8xf32> -> vector<16x8xf32>
    %48 = vector.broadcast %43 : vector<16x1xf32> to vector<16x8xf32>
    %49 = arith.mulf %47, %48 : vector<16x8xf32>
    %50 = vector.extract_strided_slice %10 {offsets = [0, 1], sizes = [16, 1], strides = [1, 1]} : vector<16x4xf32> to vector<16x1xf32>
    %51 = vector.extract_strided_slice %11 {offsets = [1, 0], sizes = [1, 16], strides = [1, 1]} : vector<4x16xf32> to vector<1x16xf32>
    %52 = vector.broadcast %50 : vector<16x1xf32> to vector<16x16xf32>
    %53 = vector.broadcast %51 : vector<1x16xf32> to vector<16x16xf32>
    %54 = arith.addf %52, %53 : vector<16x16xf32>
    %cst_29 = arith.constant 0.000000e+00 : f32
    %55 = vector.broadcast %cst_29 : f32 to vector<16x16xf32>
    %56 = arith.cmpf ogt, %54, %55 : vector<16x16xf32>
    %cst_30 = arith.constant 2.000000e-01 : f32
    %57 = vector.broadcast %cst_30 : f32 to vector<16x16xf32>
    %58 = arith.mulf %57, %54 : vector<16x16xf32>
    %59 = arith.select %56, %54, %58 : vector<16x16xi1>, vector<16x16xf32>
    %60 = arith.addf %59, %21 : vector<16x16xf32>
    %cst_31 = arith.constant dense<0xFF800000> : vector<16xf32>
    %61 = vector.multi_reduction <maximumf>, %60, %cst_31 [1] : vector<16x16xf32> to vector<16xf32>
    %62 = vector.shape_cast %61 : vector<16xf32> to vector<16x1xf32>
    %63 = vector.broadcast %62 : vector<16x1xf32> to vector<16x16xf32>
    %64 = arith.subf %60, %63 : vector<16x16xf32>
    %65 = math.exp %64 : vector<16x16xf32>
    %cst_32 = arith.constant dense<0.000000e+00> : vector<16xf32>
    %66 = vector.multi_reduction <add>, %65, %cst_32 [1] : vector<16x16xf32> to vector<16xf32>
    %67 = vector.shape_cast %66 : vector<16xf32> to vector<16x1xf32>
    %68 = tpu.reciprocal %67 {approx = true} : vector<16x1xf32> -> vector<16x1xf32>
    %69 = arith.mulf %68, %23 : vector<16x1xf32>
    %70 = vector.extract_strided_slice %8 {offsets = [0, 8], sizes = [16, 8], strides = [1, 1]} : vector<16x32xf32> to vector<16x8xf32>
    %71 = arith.truncf %65 : vector<16x16xf32> to vector<16x16xbf16>
    %72 = arith.truncf %70 : vector<16x8xf32> to vector<16x8xbf16>
    %cst_33 = arith.constant dense<0.000000e+00> : vector<16x8xf32>
    %73 = tpu.matmul %71, %72, %cst_33 {dimension_numbers = #tpu.dot_dimension_numbers<[1], [0], [0], [1], [0, 0, 1, 1], [], []>} : vector<16x16xbf16>, vector<16x8xbf16>, vector<16x8xf32> -> vector<16x8xf32>
    %74 = vector.broadcast %69 : vector<16x1xf32> to vector<16x8xf32>
    %75 = arith.mulf %73, %74 : vector<16x8xf32>
    %76 = vector.extract_strided_slice %10 {offsets = [0, 2], sizes = [16, 1], strides = [1, 1]} : vector<16x4xf32> to vector<16x1xf32>
    %77 = vector.extract_strided_slice %11 {offsets = [2, 0], sizes = [1, 16], strides = [1, 1]} : vector<4x16xf32> to vector<1x16xf32>
    %78 = vector.broadcast %76 : vector<16x1xf32> to vector<16x16xf32>
    %79 = vector.broadcast %77 : vector<1x16xf32> to vector<16x16xf32>
    %80 = arith.addf %78, %79 : vector<16x16xf32>
    %cst_34 = arith.constant 0.000000e+00 : f32
    %81 = vector.broadcast %cst_34 : f32 to vector<16x16xf32>
    %82 = arith.cmpf ogt, %80, %81 : vector<16x16xf32>
    %cst_35 = arith.constant 2.000000e-01 : f32
    %83 = vector.broadcast %cst_35 : f32 to vector<16x16xf32>
    %84 = arith.mulf %83, %80 : vector<16x16xf32>
    %85 = arith.select %82, %80, %84 : vector<16x16xi1>, vector<16x16xf32>
    %86 = arith.addf %85, %21 : vector<16x16xf32>
    %cst_36 = arith.constant dense<0xFF800000> : vector<16xf32>
    %87 = vector.multi_reduction <maximumf>, %86, %cst_36 [1] : vector<16x16xf32> to vector<16xf32>
    %88 = vector.shape_cast %87 : vector<16xf32> to vector<16x1xf32>
    %89 = vector.broadcast %88 : vector<16x1xf32> to vector<16x16xf32>
    %90 = arith.subf %86, %89 : vector<16x16xf32>
    %91 = math.exp %90 : vector<16x16xf32>
    %cst_37 = arith.constant dense<0.000000e+00> : vector<16xf32>
    %92 = vector.multi_reduction <add>, %91, %cst_37 [1] : vector<16x16xf32> to vector<16xf32>
    %93 = vector.shape_cast %92 : vector<16xf32> to vector<16x1xf32>
    %94 = tpu.reciprocal %93 {approx = true} : vector<16x1xf32> -> vector<16x1xf32>
    %95 = arith.mulf %94, %23 : vector<16x1xf32>
    %96 = vector.extract_strided_slice %8 {offsets = [0, 16], sizes = [16, 8], strides = [1, 1]} : vector<16x32xf32> to vector<16x8xf32>
    %97 = arith.truncf %91 : vector<16x16xf32> to vector<16x16xbf16>
    %98 = arith.truncf %96 : vector<16x8xf32> to vector<16x8xbf16>
    %cst_38 = arith.constant dense<0.000000e+00> : vector<16x8xf32>
    %99 = tpu.matmul %97, %98, %cst_38 {dimension_numbers = #tpu.dot_dimension_numbers<[1], [0], [0], [1], [0, 0, 1, 1], [], []>} : vector<16x16xbf16>, vector<16x8xbf16>, vector<16x8xf32> -> vector<16x8xf32>
    %100 = vector.broadcast %95 : vector<16x1xf32> to vector<16x8xf32>
    %101 = arith.mulf %99, %100 : vector<16x8xf32>
    %102 = vector.extract_strided_slice %10 {offsets = [0, 3], sizes = [16, 1], strides = [1, 1]} : vector<16x4xf32> to vector<16x1xf32>
    %103 = vector.extract_strided_slice %11 {offsets = [3, 0], sizes = [1, 16], strides = [1, 1]} : vector<4x16xf32> to vector<1x16xf32>
    %104 = vector.broadcast %102 : vector<16x1xf32> to vector<16x16xf32>
    %105 = vector.broadcast %103 : vector<1x16xf32> to vector<16x16xf32>
    %106 = arith.addf %104, %105 : vector<16x16xf32>
    %cst_39 = arith.constant 0.000000e+00 : f32
    %107 = vector.broadcast %cst_39 : f32 to vector<16x16xf32>
    %108 = arith.cmpf ogt, %106, %107 : vector<16x16xf32>
    %cst_40 = arith.constant 2.000000e-01 : f32
    %109 = vector.broadcast %cst_40 : f32 to vector<16x16xf32>
    %110 = arith.mulf %109, %106 : vector<16x16xf32>
    %111 = arith.select %108, %106, %110 : vector<16x16xi1>, vector<16x16xf32>
    %112 = arith.addf %111, %21 : vector<16x16xf32>
    %cst_41 = arith.constant dense<0xFF800000> : vector<16xf32>
    %113 = vector.multi_reduction <maximumf>, %112, %cst_41 [1] : vector<16x16xf32> to vector<16xf32>
    %114 = vector.shape_cast %113 : vector<16xf32> to vector<16x1xf32>
    %115 = vector.broadcast %114 : vector<16x1xf32> to vector<16x16xf32>
    %116 = arith.subf %112, %115 : vector<16x16xf32>
    %117 = math.exp %116 : vector<16x16xf32>
    %cst_42 = arith.constant dense<0.000000e+00> : vector<16xf32>
    %118 = vector.multi_reduction <add>, %117, %cst_42 [1] : vector<16x16xf32> to vector<16xf32>
    %119 = vector.shape_cast %118 : vector<16xf32> to vector<16x1xf32>
    %120 = tpu.reciprocal %119 {approx = true} : vector<16x1xf32> -> vector<16x1xf32>
    %121 = arith.mulf %120, %23 : vector<16x1xf32>
    %122 = vector.extract_strided_slice %8 {offsets = [0, 24], sizes = [16, 8], strides = [1, 1]} : vector<16x32xf32> to vector<16x8xf32>
    %123 = arith.truncf %117 : vector<16x16xf32> to vector<16x16xbf16>
    %124 = arith.truncf %122 : vector<16x8xf32> to vector<16x8xbf16>
    %cst_43 = arith.constant dense<0.000000e+00> : vector<16x8xf32>
    %125 = tpu.matmul %123, %124, %cst_43 {dimension_numbers = #tpu.dot_dimension_numbers<[1], [0], [0], [1], [0, 0, 1, 1], [], []>} : vector<16x16xbf16>, vector<16x8xbf16>, vector<16x8xf32> -> vector<16x8xf32>
    %126 = vector.broadcast %121 : vector<16x1xf32> to vector<16x8xf32>
    %127 = arith.mulf %125, %126 : vector<16x8xf32>
    %128 = tpu.concatenate %49, %75, %101, %127 in 1 : vector<16x8xf32>, vector<16x8xf32>, vector<16x8xf32>, vector<16x8xf32> -> vector<16x32xf32>
    %129 = vector.broadcast %6 : vector<1x32xf32> to vector<16x32xf32>
    %130 = arith.addf %128, %129 : vector<16x32xf32>
    %cst_44 = arith.constant 0.000000e+00 : f32
    %131 = vector.broadcast %cst_44 : f32 to vector<16x32xf32>
    %132 = arith.cmpf ogt, %130, %131 : vector<16x32xf32>
    %cst_45 = arith.constant 0.00999999977 : f32
    %133 = vector.broadcast %cst_45 : f32 to vector<16x32xf32>
    %134 = arith.mulf %133, %130 : vector<16x32xf32>
    %135 = arith.select %132, %130, %134 : vector<16x32xi1>, vector<16x32xf32>
    %c0_46 = arith.constant 0 : index
    %c0_47 = arith.constant 0 : index
    %136 = vector.load %arg9[%c0_46, %c0_47] : memref<16x32xf32, #tpu.memory_space<vmem>>, vector<16x32xf32>
    tpu.vector_store %arg9[%c0_46, %c0_47], %135 {strides = array<i32>} : memref<16x32xf32, #tpu.memory_space<vmem>>, vector<16x32xf32>,
    return
  }
  func.func @transform_0(%arg0: i32) -> (i32, i32) {
    %c0_i32 = arith.constant 0 : i32
    %c0_i32_0 = arith.constant 0 : i32
    return %arg0, %c0_i32 : i32, i32
  }
  func.func @transform_1(%arg0: i32) -> (i32, i32) {
    %c0_i32 = arith.constant 0 : i32
    %c0_i32_0 = arith.constant 0 : i32
    %c0_i32_1 = arith.constant 0 : i32
    return %c0_i32, %c0_i32_0 : i32, i32
  }
  func.func @transform_2(%arg0: i32) -> (i32, i32) {
    %c0_i32 = arith.constant 0 : i32
    %c0_i32_0 = arith.constant 0 : i32
    %c0_i32_1 = arith.constant 0 : i32
    return %c0_i32, %c0_i32_0 : i32, i32
  }
  func.func @transform_3(%arg0: i32) -> (i32, i32) {
    %c0_i32 = arith.constant 0 : i32
    %c0_i32_0 = arith.constant 0 : i32
    %c0_i32_1 = arith.constant 0 : i32
    return %c0_i32, %c0_i32_0 : i32, i32
  }
  func.func @transform_4(%arg0: i32) -> (i32, i32) {
    %c0_i32 = arith.constant 0 : i32
    %c0_i32_0 = arith.constant 0 : i32
    %c0_i32_1 = arith.constant 0 : i32
    return %c0_i32, %c0_i32_0 : i32, i32
  }
  func.func @transform_5(%arg0: i32) -> (i32, i32) {
    %c0_i32 = arith.constant 0 : i32
    %c0_i32_0 = arith.constant 0 : i32
    %c0_i32_1 = arith.constant 0 : i32
    return %c0_i32, %c0_i32_0 : i32, i32
  }
  func.func @transform_6(%arg0: i32) -> (i32, i32) {
    %c0_i32 = arith.constant 0 : i32
    %c0_i32_0 = arith.constant 0 : i32
    %c0_i32_1 = arith.constant 0 : i32
    return %c0_i32, %c0_i32_0 : i32, i32
  }
  func.func @transform_7(%arg0: i32) -> (i32, i32) {
    %c0_i32 = arith.constant 0 : i32
    %c0_i32_0 = arith.constant 0 : i32
    return %arg0, %c0_i32 : i32, i32
  }
  func.func @transform_8(%arg0: i32) -> (i32, i32) {
    %c0_i32 = arith.constant 0 : i32
    %c0_i32_0 = arith.constant 0 : i32
    return %arg0, %c0_i32 : i32, i32
  }
}

</mosaic_0001>

<llo_original>
// kernel: tpu_custom_call.1
$region0: #{tpu_custom_call.1}
  #allocation0 [shape = 'u32[]', space=smem, size = 0x4, offset = 0x4, fixed_abs, tag = 'smem constant byte address 0x4 - core index']
  #allocation1 [shape = 'u32[144,128]{1,0:T(1,128)}', space=vmem, size = 0x12000, scoped, tag = 'internal scratch']
  %s0 = inlined_call_operand.hbm [shape: f32[16,32], index: 0, kind: input, shape index: {}]
  %s1 = inlined_call_operand.hbm [shape: f32[16,32], index: 1, kind: input, shape index: {}]
  %s2 = inlined_call_operand.hbm [shape: f32[32,32], index: 2, kind: input, shape index: {}]
  %s3 = inlined_call_operand.hbm [shape: f32[32,32], index: 3, kind: input, shape index: {}]
  %s4 = inlined_call_operand.hbm [shape: f32[4,32], index: 4, kind: input, shape index: {}]
  %s5 = inlined_call_operand.hbm [shape: f32[32,4], index: 5, kind: input, shape index: {}]
  %s6 = inlined_call_operand.hbm [shape: f32[1,32], index: 6, kind: input, shape index: {}]
  %s7 = inlined_call_operand.hbm [shape: s8[16,16], index: 7, kind: input, shape index: {}]
  %s8 = inlined_call_operand.hbm [shape: f32[16,32], index: 8, kind: output, shape index: {}]
  %s9 = sld [smem:[#allocation0]]
  $region74: #{tpu_custom_call.1} parent=0
    _
  %s11 = ssub.s32 1, %s9
  %s12 = scalar_select 0, %s11, %s9
  $region1: #{tpu_custom_call.1} parent=0
    #allocation2 [shape = 'u8[8192]{0}', space=vmem, size = 0x2000, scoped, tag = 'input window, operand 0, single buffered']
    #allocation3 [shape = 's32[1]{0}', space=sflag, size = 0x4, scoped, tag = 'scoped memory for tpu_custom_call.1']
    #allocation4 [shape = 's32[1]{0}', space=sflag, size = 0x4, scoped, tag = 'scoped memory for tpu_custom_call.1']
    #allocation5 [shape = 'u8[8192]{0}', space=vmem, size = 0x2000, scoped, tag = 'input window, operand 1, single buffered']
    #allocation6 [shape = 's32[1]{0}', space=sflag, size = 0x4, scoped, tag = 'scoped memory for tpu_custom_call.1']
    #allocation7 [shape = 'u8[16384]{0}', space=vmem, size = 0x4000, scoped, tag = 'input window, operand 2, single buffered']
    #allocation8 [shape = 'u8[16384]{0}', space=vmem, size = 0x4000, scoped, tag = 'input window, operand 3, single buffered']
    #allocation9 [shape = 's32[1]{0}', space=sflag, size = 0x4, scoped, tag = 'scoped memory for tpu_custom_call.1']
    #allocation10 [shape = 'u8[2048]{0}', space=vmem, size = 0x800, scoped, tag = 'input window, operand 4, single buffered']
    #allocation11 [shape = 'u8[16384]{0}', space=vmem, size = 0x4000, scoped, tag = 'input window, operand 5, single buffered']
    #allocation12 [shape = 's32[1]{0}', space=sflag, size = 0x4, scoped, tag = 'scoped memory for tpu_custom_call.1']
    #allocation13 [shape = 'u8[512]{0}', space=vmem, size = 0x400, scoped, tag = 'input window, operand 6, single buffered']
    #allocation14 [shape = 'u8[2048]{0}', space=vmem, size = 0x800, scoped, tag = 'input window, operand 7, single buffered']
    #allocation15 [shape = 's32[1]{0}', space=sflag, size = 0x4, scoped, tag = 'scoped memory for tpu_custom_call.1']
    #allocation16 [shape = 'u8[8192]{0}', space=vmem, size = 0x2000, scoped, tag = 'output window, operand 0, single buffered']
    %13 = vsyncpa [#allocation3], 0
    %14 = vsyncpa [#allocation6], 0
    %15 = vsyncpa [#allocation9], 0
    %16 = vsyncpa [#allocation12], 0
    %17 = vsyncpa [#allocation15], 0
    %18 = vsyncpa [#allocation4], 0
    // Predicated region
    $region2: #{tpu_custom_call.1} parent=1 // pred_check
      _
    $region3: #{tpu_custom_call.1} parent=1 // pred_check_branch
      %20 = sbr.rel (0) target = $region5
    $region4: #{tpu_custom_call.1} parent=1 // pred_region
      %s22 = ssub.s32 256, 256
      %23 = vsyncadd [#allocation3], %s22
      %s24 = sshll.u32 [#allocation2], 4
      %s25 = int_to_ptr.vmem [resolvable:$true] %s24
      %30 = dma.hbm_to_vmem [thread:$0]  %s0, 256, %s25, [#allocation3], 128, 128, 8
    $region5: #{tpu_custom_call.1} parent=1 // pred_fallthru
      _
    // Predicated region
    $region6: #{tpu_custom_call.1} parent=1 // pred_check
      _
    $region7: #{tpu_custom_call.1} parent=1 // pred_check_branch
      %32 = sbr.rel (0) target = $region9
    $region8: #{tpu_custom_call.1} parent=1 // pred_region
      %s34 = ssub.s32 256, 256
      %35 = vsyncadd [#allocation6], %s34
      %s36 = sshll.u32 [#allocation5], 4
      %s37 = int_to_ptr.vmem [resolvable:$true] %s36
      %42 = dma.hbm_to_vmem [thread:$0]  %s1, 256, %s37, [#allocation6], 128, 128, 8
    $region9: #{tpu_custom_call.1} parent=1 // pred_fallthru
      _
    // Predicated region
    $region10: #{tpu_custom_call.1} parent=1 // pred_check
      _
    $region11: #{tpu_custom_call.1} parent=1 // pred_check_branch
      %44 = sbr.rel (0) target = $region13
    $region12: #{tpu_custom_call.1} parent=1 // pred_region
      %s46 = ssub.s32 512, 512
      %47 = vsyncadd [#allocation6], %s46
      %s48 = sshll.u32 [#allocation7], 4
      %s49 = int_to_ptr.vmem [resolvable:$true] %s48
      %54 = dma.hbm_to_vmem [thread:$0]  %s2, 512, %s49, [#allocation6], 128, 128, 8
    $region13: #{tpu_custom_call.1} parent=1 // pred_fallthru
      _
    // Predicated region
    $region14: #{tpu_custom_call.1} parent=1 // pred_check
      _
    $region15: #{tpu_custom_call.1} parent=1 // pred_check_branch
      %56 = sbr.rel (0) target = $region17
    $region16: #{tpu_custom_call.1} parent=1 // pred_region
      %s58 = ssub.s32 512, 512
      %59 = vsyncadd [#allocation9], %s58
      %s60 = sshll.u32 [#allocation8], 4
      %s61 = int_to_ptr.vmem [resolvable:$true] %s60
      %66 = dma.hbm_to_vmem [thread:$0]  %s3, 512, %s61, [#allocation9], 128, 128, 8
    $region17: #{tpu_custom_call.1} parent=1 // pred_fallthru
      _
    // Predicated region
    $region18: #{tpu_custom_call.1} parent=1 // pred_check
      _
    $region19: #{tpu_custom_call.1} parent=1 // pred_check_branch
      %68 = sbr.rel (0) target = $region21
    $region20: #{tpu_custom_call.1} parent=1 // pred_region
      %s70 = ssub.s32 64, 64
      %71 = vsyncadd [#allocation9], %s70
      %s73 = sshll.u32 [#allocation10], 4
      %s74 = int_to_ptr.vmem [resolvable:$true] %s73
      %76 = dma.hbm_to_vmem [thread:$0]  %s4, 64, %s74, [#allocation9]
    $region21: #{tpu_custom_call.1} parent=1 // pred_fallthru
      _
    // Predicated region
    $region22: #{tpu_custom_call.1} parent=1 // pred_check
      _
    $region23: #{tpu_custom_call.1} parent=1 // pred_check_branch
      %78 = sbr.rel (0) target = $region25
    $region24: #{tpu_custom_call.1} parent=1 // pred_region
      %s80 = ssub.s32 512, 512
      %81 = vsyncadd [#allocation12], %s80
      %s82 = sshll.u32 [#allocation11], 4
      %s83 = int_to_ptr.vmem [resolvable:$true] %s82
      %88 = dma.hbm_to_vmem [thread:$0]  %s5, 512, %s83, [#allocation12], 128, 128, 8
    $region25: #{tpu_custom_call.1} parent=1 // pred_fallthru
      _
    // Predicated region
    $region26: #{tpu_custom_call.1} parent=1 // pred_check
      _
    $region27: #{tpu_custom_call.1} parent=1 // pred_check_branch
      %90 = sbr.rel (0) target = $region29
    $region28: #{tpu_custom_call.1} parent=1 // pred_region
      %s92 = ssub.s32 16, 16
      %93 = vsyncadd [#allocation12], %s92
      %s95 = sshll.u32 [#allocation13], 4
      %s96 = int_to_ptr.vmem [resolvable:$true] %s95
      %98 = dma.hbm_to_vmem [thread:$0]  %s6, 16, %s96, [#allocation12]
    $region29: #{tpu_custom_call.1} parent=1 // pred_fallthru
      _
    // Predicated region
    $region30: #{tpu_custom_call.1} parent=1 // pred_check
      _
    $region31: #{tpu_custom_call.1} parent=1 // pred_check_branch
      %100 = sbr.rel (0) target = $region33
    $region32: #{tpu_custom_call.1} parent=1 // pred_region
      %s102 = ssub.s32 64, 64
      %103 = vsyncadd [#allocation15], %s102
      %s104 = sshll.u32 [#allocation14], 4
      %s105 = int_to_ptr.vmem [resolvable:$true] %s104
      %110 = dma.hbm_to_vmem [thread:$0]  %s7, 64, %s105, [#allocation15], 32, 32, 2
    $region33: #{tpu_custom_call.1} parent=1 // pred_fallthru
      _
    // Predicated region
    $region34: #{tpu_custom_call.1} parent=1 // pred_check
      _
    $region35: #{tpu_custom_call.1} parent=1 // pred_check_branch
      %112 = sbr.rel (0) target = $region37
    $region36: #{tpu_custom_call.1} parent=1 // pred_region
      %113 = dma.done [#allocation3], 256
    $region37: #{tpu_custom_call.1} parent=1 // pred_fallthru
      _
    // Predicated region
    $region38: #{tpu_custom_call.1} parent=1 // pred_check
      _
    $region39: #{tpu_custom_call.1} parent=1 // pred_check_branch
      %115 = sbr.rel (0) target = $region41
    $region40: #{tpu_custom_call.1} parent=1 // pred_region
      %116 = dma.done [#allocation6], 256
    $region41: #{tpu_custom_call.1} parent=1 // pred_fallthru
      _
    // Predicated region
    $region42: #{tpu_custom_call.1} parent=1 // pred_check
      _
    $region43: #{tpu_custom_call.1} parent=1 // pred_check_branch
      %118 = sbr.rel (0) target = $region45
    $region44: #{tpu_custom_call.1} parent=1 // pred_region
      %119 = dma.done [#allocation6], 512
    $region45: #{tpu_custom_call.1} parent=1 // pred_fallthru
      _
    // Predicated region
    $region46: #{tpu_custom_call.1} parent=1 // pred_check
      _
    $region47: #{tpu_custom_call.1} parent=1 // pred_check_branch
      %121 = sbr.rel (0) target = $region49
    $region48: #{tpu_custom_call.1} parent=1 // pred_region
      %122 = dma.done [#allocation9], 512
    $region49: #{tpu_custom_call.1} parent=1 // pred_fallthru
      _
    // Predicated region
    $region50: #{tpu_custom_call.1} parent=1 // pred_check
      _
    $region51: #{tpu_custom_call.1} parent=1 // pred_check_branch
      %124 = sbr.rel (0) target = $region53
    $region52: #{tpu_custom_call.1} parent=1 // pred_region
      %125 = dma.done [#allocation9], 64
    $region53: #{tpu_custom_call.1} parent=1 // pred_fallthru
      _
    // Predicated region
    $region54: #{tpu_custom_call.1} parent=1 // pred_check
      _
    $region55: #{tpu_custom_call.1} parent=1 // pred_check_branch
      %127 = sbr.rel (0) target = $region57
    $region56: #{tpu_custom_call.1} parent=1 // pred_region
      %128 = dma.done [#allocation12], 512
    $region57: #{tpu_custom_call.1} parent=1 // pred_fallthru
      _
    // Predicated region
    $region58: #{tpu_custom_call.1} parent=1 // pred_check
      _
    $region59: #{tpu_custom_call.1} parent=1 // pred_check_branch
      %130 = sbr.rel (0) target = $region61
    $region60: #{tpu_custom_call.1} parent=1 // pred_region
      %131 = dma.done [#allocation12], 16
    $region61: #{tpu_custom_call.1} parent=1 // pred_fallthru
      _
    // Predicated region
    $region62: #{tpu_custom_call.1} parent=1 // pred_check
      _
    $region63: #{tpu_custom_call.1} parent=1 // pred_check_branch
      %133 = sbr.rel (0) target = $region65
    $region64: #{tpu_custom_call.1} parent=1 // pred_region
      %134 = dma.done [#allocation15], 64
    $region65: #{tpu_custom_call.1} parent=1 // pred_fallthru
      _
    %v136 = vld [vmem:[#allocation2] sm:$0xff]
    %v137 = vld [vmem:[#allocation2 + $0x8] sm:$0xff]
    %v138 = vld [vmem:[#allocation5] sm:$0xff]
    %v139 = vld [vmem:[#allocation5 + $0x8] sm:$0xff]
    %v140 = vld [vmem:[#allocation7] sm:$0xff]
    %v141 = vld [vmem:[#allocation7 + $0x8] sm:$0xff]
    %v142 = vld [vmem:[#allocation7 + $0x10] sm:$0xff]
    %v143 = vld [vmem:[#allocation7 + $0x18] sm:$0xff]
    %v144 = vld [vmem:[#allocation8] sm:$0xff]
    %v145 = vld [vmem:[#allocation8 + $0x8] sm:$0xff]
    %v146 = vld [vmem:[#allocation8 + $0x10] sm:$0xff]
    %v147 = vld [vmem:[#allocation8 + $0x18] sm:$0xff]
    %v148 = vld [vmem:[#allocation10] sm:$0xf]
    %v149 = vld [vmem:[#allocation11] sm:$0xff]
    %v150 = vld [vmem:[#allocation11 + $0x8] sm:$0xff]
    %v151 = vld [vmem:[#allocation11 + $0x10] sm:$0xff]
    %v152 = vld [vmem:[#allocation11 + $0x18] sm:$0xff]
    %v153 = vld [vmem:[#allocation13] sm:$0x1]
    %v154 = vld [vmem:[#allocation14] sm:$0x3]
    %v155 = vld [vmem:[#allocation14 + $0x2] sm:$0x3]
    %vm156 = vcmask 261120
    %v158 = vsel %vm156, %v138, 0
    %v161 = vsel %vm156, %v139, 0
    %163 = vmatprep.subr.mxu0 0.0
    %164 = vmatpush1.msra.mxu0 %v140
    %165 = vmatprep.subr.mxu0 0.0
    %166 = vmatpush1.msra.mxu0 %v141
    %167 = vmatprep.subr.mxu0 0.0
    %168 = vmatpush1.msra.mxu0 %v142
    %169 = vmatprep.subr.mxu0 0.0
    %170 = vmatpush1.msra.mxu0 %v143
    %171 = vmatprep.subr.mxu0 0.0
    %172 = vmatpush1.msra.mxu0 0.0
    %173 = vmatprep.subr.mxu0 0.0
    %174 = vmatpush1.msra.mxu0 0.0
    %175 = vmatprep.subr.mxu0 0.0
    %176 = vmatpush1.msra.mxu0 0.0
    %177 = vmatprep.subr.mxu0 0.0
    %178 = vmatpush1.msra.mxu0 0.0
    %179 = vmatprep.subr.mxu0 0.0
    %180 = vmatpush1.msra.mxu0 0.0
    %181 = vmatprep.subr.mxu0 0.0
    %182 = vmatpush1.msra.mxu0 0.0
    %183 = vmatprep.subr.mxu0 0.0
    %184 = vmatpush1.msra.mxu0 0.0
    %185 = vmatprep.subr.mxu0 0.0
    %186 = vmatpush1.msra.mxu0 0.0
    %187 = vmatprep.subr.mxu0 0.0
    %188 = vmatpush1.msra.mxu0 0.0
    %189 = vmatprep.subr.mxu0 0.0
    %190 = vmatpush1.msra.mxu0 0.0
    %191 = vmatprep.subr.mxu0 0.0
    %192 = vmatpush1.msra.mxu0 0.0
    %193 = vmatprep.subr.mxu0 0.0
    %194 = vmatpush1.msra.mxu0 0.0
    %195 = vmatprep.subr.mxu0 0.0
    %196 = vmatpush1.msra.mxu0 0.0
    %197 = vmatprep.subr.mxu0 0.0
    %198 = vmatpush1.msra.mxu0 0.0
    %199 = vmatprep.subr.mxu0 0.0
    %200 = vmatpush1.msra.mxu0 0.0
    %201 = vmatprep.subr.mxu0 0.0
    %202 = vmatpush1.msra.mxu0 0.0
    %203 = vmatprep.subr.mxu0 0.0
    %204 = vmatpush1.msra.mxu0 0.0
    %205 = vmatprep.subr.mxu0 0.0
    %206 = vmatpush1.msra.mxu0 0.0
    %207 = vmatprep.subr.mxu0 0.0
    %208 = vmatpush1.msra.mxu0 0.0
    %209 = vmatprep.subr.mxu0 0.0
    %210 = vmatpush1.msra.mxu0 0.0
    %211 = vmatprep.subr.mxu0 0.0
    %212 = vmatpush1.msra.mxu0 0.0
    %213 = vmatprep.subr.mxu0 0.0
    %214 = vmatpush1.msra.mxu0 0.0
    %215 = vmatprep.subr.mxu0 0.0
    %216 = vmatpush1.msra.mxu0 0.0
    %217 = vmatprep.subr.mxu0 0.0
    %218 = vmatpush1.msra.mxu0 0.0
    %219 = vmatprep.subr.mxu0 0.0
    %220 = vmatpush1.msra.mxu0 0.0
    %221 = vmatprep.subr.mxu0 0.0
    %222 = vmatpush1.msra.mxu0 0.0
    %223 = vmatprep.subr.mxu0 0.0
    %224 = vmatpush1.msra.mxu0 0.0
    %225 = vmatprep.subr.mxu0 0.0
    %226 = vmatpush1.msra.mxu0 0.0
    %227 = vmatprep.mubr.f32.mxu0 0.0
    %228 = vmatmul.mubr.f32.gmra.mrb[0].mxu0 %v158
    %v229 = vpop.f32.mrb[0].mxu0
    %v230 = vadd.f32 0.0, %v229
    %v231 = vpop.f32.mrb[0].mxu0
    %232 = vmatprep.mubr.f32.mxu0 0.0
    %233 = vmatmul.mubr.f32.gmra.mrb[0].mxu0 %v161
    %v234 = vpop.f32.mrb[0].mxu0
    %v235 = vadd.f32 0.0, %v234
    %v236 = vpop.f32.mrb[0].mxu0
    %237 = vdwg.mxu0
    %v239 = vsel %vm156, %v136, 0
    %v242 = vsel %vm156, %v137, 0
    %244 = vmatprep.subr.mxu0 0.0
    %245 = vmatpush1.msra.mxu0 %v144
    %246 = vmatprep.subr.mxu0 0.0
    %247 = vmatpush1.msra.mxu0 %v145
    %248 = vmatprep.subr.mxu0 0.0
    %249 = vmatpush1.msra.mxu0 %v146
    %250 = vmatprep.subr.mxu0 0.0
    %251 = vmatpush1.msra.mxu0 %v147
    %252 = vmatprep.subr.mxu0 0.0
    %253 = vmatpush1.msra.mxu0 0.0
    %254 = vmatprep.subr.mxu0 0.0
    %255 = vmatpush1.msra.mxu0 0.0
    %256 = vmatprep.subr.mxu0 0.0
    %257 = vmatpush1.msra.mxu0 0.0
    %258 = vmatprep.subr.mxu0 0.0
    %259 = vmatpush1.msra.mxu0 0.0
    %260 = vmatprep.subr.mxu0 0.0
    %261 = vmatpush1.msra.mxu0 0.0
    %262 = vmatprep.subr.mxu0 0.0
    %263 = vmatpush1.msra.mxu0 0.0
    %264 = vmatprep.subr.mxu0 0.0
    %265 = vmatpush1.msra.mxu0 0.0
    %266 = vmatprep.subr.mxu0 0.0
    %267 = vmatpush1.msra.mxu0 0.0
    %268 = vmatprep.subr.mxu0 0.0
    %269 = vmatpush1.msra.mxu0 0.0
    %270 = vmatprep.subr.mxu0 0.0
    %271 = vmatpush1.msra.mxu0 0.0
    %272 = vmatprep.subr.mxu0 0.0
    %273 = vmatpush1.msra.mxu0 0.0
    %274 = vmatprep.subr.mxu0 0.0
    %275 = vmatpush1.msra.mxu0 0.0
    %276 = vmatprep.subr.mxu0 0.0
    %277 = vmatpush1.msra.mxu0 0.0
    %278 = vmatprep.subr.mxu0 0.0
    %279 = vmatpush1.msra.mxu0 0.0
    %280 = vmatprep.subr.mxu0 0.0
    %281 = vmatpush1.msra.mxu0 0.0
    %282 = vmatprep.subr.mxu0 0.0
    %283 = vmatpush1.msra.mxu0 0.0
    %284 = vmatprep.subr.mxu0 0.0
    %285 = vmatpush1.msra.mxu0 0.0
    %286 = vmatprep.subr.mxu0 0.0
    %287 = vmatpush1.msra.mxu0 0.0
    %288 = vmatprep.subr.mxu0 0.0
    %289 = vmatpush1.msra.mxu0 0.0
    %290 = vmatprep.subr.mxu0 0.0
    %291 = vmatpush1.msra.mxu0 0.0
    %292 = vmatprep.subr.mxu0 0.0
    %293 = vmatpush1.msra.mxu0 0.0
    %294 = vmatprep.subr.mxu0 0.0
    %295 = vmatpush1.msra.mxu0 0.0
    %296 = vmatprep.subr.mxu0 0.0
    %297 = vmatpush1.msra.mxu0 0.0
    %298 = vmatprep.subr.mxu0 0.0
    %299 = vmatpush1.msra.mxu0 0.0
    %300 = vmatprep.subr.mxu0 0.0
    %301 = vmatpush1.msra.mxu0 0.0
    %302 = vmatprep.subr.mxu0 0.0
    %303 = vmatpush1.msra.mxu0 0.0
    %304 = vmatprep.subr.mxu0 0.0
    %305 = vmatpush1.msra.mxu0 0.0
    %306 = vmatprep.subr.mxu0 0.0
    %307 = vmatpush1.msra.mxu0 0.0
    %308 = vmatprep.mubr.f32.mxu0 0.0
    %309 = vmatmul.mubr.f32.gmra.mrb[0].mxu0 %v239
    %v310 = vpop.f32.mrb[0].mxu0
    %v311 = vadd.f32 0.0, %v310
    %v312 = vpop.f32.mrb[0].mxu0
    %313 = vmatprep.mubr.f32.mxu0 0.0
    %314 = vmatmul.mubr.f32.gmra.mrb[0].mxu0 %v242
    %v315 = vpop.f32.mrb[0].mxu0
    %v316 = vadd.f32 0.0, %v315
    %v317 = vpop.f32.mrb[0].mxu0
    %318 = vdwg.mxu0
    %v320 = vsel %vm156, %v311, 0
    %v323 = vsel %vm156, %v316, 0
    %325 = vmatprep.subr.mxu0 0.0
    %326 = vmatpush1.msra.mxu0 %v149
    %327 = vmatprep.subr.mxu0 0.0
    %328 = vmatpush1.msra.mxu0 %v150
    %329 = vmatprep.subr.mxu0 0.0
    %330 = vmatpush1.msra.mxu0 %v151
    %331 = vmatprep.subr.mxu0 0.0
    %332 = vmatpush1.msra.mxu0 %v152
    %333 = vmatprep.subr.mxu0 0.0
    %334 = vmatpush1.msra.mxu0 0.0
    %335 = vmatprep.subr.mxu0 0.0
    %336 = vmatpush1.msra.mxu0 0.0
    %337 = vmatprep.subr.mxu0 0.0
    %338 = vmatpush1.msra.mxu0 0.0
    %339 = vmatprep.subr.mxu0 0.0
    %340 = vmatpush1.msra.mxu0 0.0
    %341 = vmatprep.subr.mxu0 0.0
    %342 = vmatpush1.msra.mxu0 0.0
    %343 = vmatprep.subr.mxu0 0.0
    %344 = vmatpush1.msra.mxu0 0.0
    %345 = vmatprep.subr.mxu0 0.0
    %346 = vmatpush1.msra.mxu0 0.0
    %347 = vmatprep.subr.mxu0 0.0
    %348 = vmatpush1.msra.mxu0 0.0
    %349 = vmatprep.subr.mxu0 0.0
    %350 = vmatpush1.msra.mxu0 0.0
    %351 = vmatprep.subr.mxu0 0.0
    %352 = vmatpush1.msra.mxu0 0.0
    %353 = vmatprep.subr.mxu0 0.0
    %354 = vmatpush1.msra.mxu0 0.0
    %355 = vmatprep.subr.mxu0 0.0
    %356 = vmatpush1.msra.mxu0 0.0
    %357 = vmatprep.subr.mxu0 0.0
    %358 = vmatpush1.msra.mxu0 0.0
    %359 = vmatprep.subr.mxu0 0.0
    %360 = vmatpush1.msra.mxu0 0.0
    %361 = vmatprep.subr.mxu0 0.0
    %362 = vmatpush1.msra.mxu0 0.0
    %363 = vmatprep.subr.mxu0 0.0
    %364 = vmatpush1.msra.mxu0 0.0
    %365 = vmatprep.subr.mxu0 0.0
    %366 = vmatpush1.msra.mxu0 0.0
    %367 = vmatprep.subr.mxu0 0.0
    %368 = vmatpush1.msra.mxu0 0.0
    %369 = vmatprep.subr.mxu0 0.0
    %370 = vmatpush1.msra.mxu0 0.0
    %371 = vmatprep.subr.mxu0 0.0
    %372 = vmatpush1.msra.mxu0 0.0
    %373 = vmatprep.subr.mxu0 0.0
    %374 = vmatpush1.msra.mxu0 0.0
    %375 = vmatprep.subr.mxu0 0.0
    %376 = vmatpush1.msra.mxu0 0.0
    %377 = vmatprep.subr.mxu0 0.0
    %378 = vmatpush1.msra.mxu0 0.0
    %379 = vmatprep.subr.mxu0 0.0
    %380 = vmatpush1.msra.mxu0 0.0
    %381 = vmatprep.subr.mxu0 0.0
    %382 = vmatpush1.msra.mxu0 0.0
    %383 = vmatprep.subr.mxu0 0.0
    %384 = vmatpush1.msra.mxu0 0.0
    %385 = vmatprep.subr.mxu0 0.0
    %386 = vmatpush1.msra.mxu0 0.0
    %387 = vmatprep.subr.mxu0 0.0
    %388 = vmatpush1.msra.mxu0 0.0
    %389 = vmatprep.mubr.f32.mxu0 0.0
    %390 = vmatmul.mubr.f32.gmra.mrb[0].mxu0 %v320
    %v391 = vpop.f32.mrb[0].mxu0
    %v392 = vadd.f32 0.0, %v391
    %v393 = vpop.f32.mrb[0].mxu0
    %394 = vmatprep.mubr.f32.mxu0 0.0
    %395 = vmatmul.mubr.f32.gmra.mrb[0].mxu0 %v323
    %v396 = vpop.f32.mrb[0].mxu0
    %v397 = vadd.f32 0.0, %v396
    %v398 = vpop.f32.mrb[0].mxu0
    %399 = vdwg.mxu0
    %v401 = vsel %vm156, %v148, 0
    %v404 = vsel %vm156, %v230, 0
    %v407 = vsel %vm156, %v235, 0
    %409 = vmatprep.subr.mxu0 0.0
    %410 = vmatpush1.xpose.msra.mxu0 %v404
    %411 = vmatprep.subr.mxu0 0.0
    %412 = vmatpush1.xpose.msra.mxu0 %v407
    %413 = vmatprep.subr.mxu0 0.0
    %414 = vmatpush1.xpose.msra.mxu0 0.0
    %415 = vmatprep.subr.mxu0 0.0
    %416 = vmatpush1.xpose.msra.mxu0 0.0
    %417 = vmatprep.subr.mxu0 0.0
    %418 = vmatpush1.xpose.msra.mxu0 0.0
    %419 = vmatprep.subr.mxu0 0.0
    %420 = vmatpush1.xpose.msra.mxu0 0.0
    %421 = vmatprep.subr.mxu0 0.0
    %422 = vmatpush1.xpose.msra.mxu0 0.0
    %423 = vmatprep.subr.mxu0 0.0
    %424 = vmatpush1.xpose.msra.mxu0 0.0
    %425 = vmatprep.subr.mxu0 0.0
    %426 = vmatpush1.xpose.msra.mxu0 0.0
    %427 = vmatprep.subr.mxu0 0.0
    %428 = vmatpush1.xpose.msra.mxu0 0.0
    %429 = vmatprep.subr.mxu0 0.0
    %430 = vmatpush1.xpose.msra.mxu0 0.0
    %431 = vmatprep.subr.mxu0 0.0
    %432 = vmatpush1.xpose.msra.mxu0 0.0
    %433 = vmatprep.subr.mxu0 0.0
    %434 = vmatpush1.xpose.msra.mxu0 0.0
    %435 = vmatprep.subr.mxu0 0.0
    %436 = vmatpush1.xpose.msra.mxu0 0.0
    %437 = vmatprep.subr.mxu0 0.0
    %438 = vmatpush1.xpose.msra.mxu0 0.0
    %439 = vmatprep.subr.mxu0 0.0
    %440 = vmatpush1.xpose.msra.mxu0 0.0
    %441 = vmatprep.subr.mxu0 0.0
    %442 = vmatpush1.xpose.msra.mxu0 0.0
    %443 = vmatprep.subr.mxu0 0.0
    %444 = vmatpush1.xpose.msra.mxu0 0.0
    %445 = vmatprep.subr.mxu0 0.0
    %446 = vmatpush1.xpose.msra.mxu0 0.0
    %447 = vmatprep.subr.mxu0 0.0
    %448 = vmatpush1.xpose.msra.mxu0 0.0
    %449 = vmatprep.subr.mxu0 0.0
    %450 = vmatpush1.xpose.msra.mxu0 0.0
    %451 = vmatprep.subr.mxu0 0.0
    %452 = vmatpush1.xpose.msra.mxu0 0.0
    %453 = vmatprep.subr.mxu0 0.0
    %454 = vmatpush1.xpose.msra.mxu0 0.0
    %455 = vmatprep.subr.mxu0 0.0
    %456 = vmatpush1.xpose.msra.mxu0 0.0
    %457 = vmatprep.subr.mxu0 0.0
    %458 = vmatpush1.xpose.msra.mxu0 0.0
    %459 = vmatprep.subr.mxu0 0.0
    %460 = vmatpush1.xpose.msra.mxu0 0.0
    %461 = vmatprep.subr.mxu0 0.0
    %462 = vmatpush1.xpose.msra.mxu0 0.0
    %463 = vmatprep.subr.mxu0 0.0
    %464 = vmatpush1.xpose.msra.mxu0 0.0
    %465 = vmatprep.subr.mxu0 0.0
    %466 = vmatpush1.xpose.msra.mxu0 0.0
    %467 = vmatprep.subr.mxu0 0.0
    %468 = vmatpush1.xpose.msra.mxu0 0.0
    %469 = vmatprep.subr.mxu0 0.0
    %470 = vmatpush1.xpose.msra.mxu0 0.0
    %471 = vmatprep.subr.mxu0 0.0
    %472 = vmatpush1.xpose.msra.mxu0 0.0
    %473 = vmatprep.mubr.f32.mxu0 0.0
    %474 = vmatmul.mubr.f32.gmra.mrb[0].mxu0 %v401
    %v475 = vpop.f32.mrb[0].mxu0
    %v476 = vadd.f32 0.0, %v475
    %v477 = vpop.f32.mrb[0].mxu0
    %478 = vdwg.mxu0
    %v479 = vunpack.c.0.s8 %v154
    %v480 = vunpack.c.0.s8 %v155
    %v481 = vcvt.s32.f32 %v479
    %v482 = vcvt.s32.f32 %v480
    %vm483 = vcmp.gt.f32.partialorder %v481, 0.0
    %vm484 = vcmp.gt.f32.partialorder %v482, 0.0
    %v485 = vsel %vm483, 1.0, 0.0
    %v486 = vsel %vm484, 1.0, 0.0
    %v487 = vsub.f32 %v485, 1.0
    %v488 = vsub.f32 %v486, 1.0
    %v489 = vmul.f32 %v487, 1e+30
    %v490 = vmul.f32 %v488, 1e+30
    %vm491 = vcmask 130048
    %v492 = vsel %vm491, %v485, -inf
    %493 = vmax.xlane.f32.xlu0 %v492
    %v494 = vpop.xlane.xlu0 %493
    %v495 = vsel %vm491, %v486, -inf
    %496 = vmax.xlane.f32.xlu0 %v495
    %v497 = vpop.xlane.xlu0 %496
    %499 = vset.pattern.permute.xlu0 0
    %500 = vperm.xlu0 %499, %v392
    %v501 = vpop.permute.xlu0 %500
    %504 = vset.pattern.permute.xlu0 0
    %505 = vperm.xlu0 %504, %v397
    %v506 = vpop.permute.xlu0 %505
    %v508 = vlaneseq
    %v509 = vshrl.u32 %v508, 7
    %v510 = vsub.s32 0, %v509
    %v511 = vrot.slane %v476, %v510
    %v512 = vadd.f32 %v501, %v511
    %v513 = vadd.f32 %v506, %v511
    %vm514 = vcmp.gt.f32.partialorder %v512, 0.0
    %vm515 = vcmp.gt.f32.partialorder %v513, 0.0
    %v516 = vmul.f32 %v512, 0.2
    %v517 = vmul.f32 %v513, 0.2
    %v518 = vsel %vm514, %v512, %v516
    %v519 = vsel %vm515, %v513, %v517
    %v520 = vadd.f32 %v518, %v489
    %v521 = vadd.f32 %v519, %v490
    %v522 = vsel %vm491, %v520, -inf
    %523 = vmax.xlane.f32.xlu0 %v522
    %v524 = vpop.xlane.xlu0 %523
    %v525 = vsel %vm491, %v521, -inf
    %526 = vmax.xlane.f32.xlu0 %v525
    %v527 = vpop.xlane.xlu0 %526
    %v528 = vsub.f32 %v520, %v524
    %v529 = vsub.f32 %v521, %v527
    %v530 = vmul.f32 %v528, 1.442695
    %v531 = vpow.pop %v530
    %v532 = vmul.f32 %v529, 1.442695
    %v533 = vpow.pop %v532
    %v534 = vsel %vm491, %v531, 0.0
    %535 = vadd.xlane.f32.xlu0 %v534
    %v536 = vpop.xlane.xlu0 %535
    %v537 = vsel %vm491, %v533, 0.0
    %538 = vadd.xlane.f32.xlu0 %v537
    %v539 = vpop.xlane.xlu0 %538
    %v540 = vrcp.pop %v536
    %v541 = vrcp.pop %v539
    %v542 = vmul.f32 %v540, %v494
    %v543 = vmul.f32 %v541, %v497
    %v544 = vpack.c.bf16 %v533, %v531
    %v545 = vpack.c.bf16 %v235, %v230
    %v547 = vsel %vm491, %v544, 0
    %549 = vmatprep.subr.bf16.mxu0 0
    %550 = vmatpush1.bf16.msra.mxu0 %v545
    %551 = vmatprep.subr.bf16.mxu0 0
    %552 = vmatpush1.bf16.msra.mxu0 0
    %553 = vmatprep.subr.bf16.mxu0 0
    %554 = vmatpush1.bf16.msra.mxu0 0
    %555 = vmatprep.subr.bf16.mxu0 0
    %556 = vmatpush1.bf16.msra.mxu0 0
    %557 = vmatprep.subr.bf16.mxu0 0
    %558 = vmatpush1.bf16.msra.mxu0 0
    %559 = vmatprep.subr.bf16.mxu0 0
    %560 = vmatpush1.bf16.msra.mxu0 0
    %561 = vmatprep.subr.bf16.mxu0 0
    %562 = vmatpush1.bf16.msra.mxu0 0
    %563 = vmatprep.subr.bf16.mxu0 0
    %564 = vmatpush1.bf16.msra.mxu0 0
    %565 = vmatprep.subr.bf16.mxu0 0
    %566 = vmatpush1.bf16.msra.mxu0 0
    %567 = vmatprep.subr.bf16.mxu0 0
    %568 = vmatpush1.bf16.msra.mxu0 0
    %569 = vmatprep.subr.bf16.mxu0 0
    %570 = vmatpush1.bf16.msra.mxu0 0
    %571 = vmatprep.subr.bf16.mxu0 0
    %572 = vmatpush1.bf16.msra.mxu0 0
    %573 = vmatprep.subr.bf16.mxu0 0
    %574 = vmatpush1.bf16.msra.mxu0 0
    %575 = vmatprep.subr.bf16.mxu0 0
    %576 = vmatpush1.bf16.msra.mxu0 0
    %577 = vmatprep.subr.bf16.mxu0 0
    %578 = vmatpush1.bf16.msra.mxu0 0
    %579 = vmatprep.subr.bf16.mxu0 0
    %580 = vmatpush1.bf16.msra.mxu0 0
    %581 = vmatprep.mubr.bf16.mxu0 0
    %582 = vmatmul.mubr.bf16.gmra.mrb[0].mxu0 %v547
    %v583 = vpop.f32.mrb[0].mxu0
    %v584 = vadd.f32 0.0, %v583
    %v585 = vpop.f32.mrb[0].mxu0
    %v586 = vpop.f32.mrb[0].mxu0
    %v587 = vadd.f32 0.0, %v586
    %v588 = vpop.f32.mrb[0].mxu0
    %589 = vdwg.mxu0
    %v590 = vmul.f32 %v584, %v542
    %v591 = vmul.f32 %v587, %v543
    %592 = vset.pattern.permute.xlu0 1
    %593 = vperm.xlu0 %592, %v392
    %v594 = vpop.permute.xlu0 %593
    %596 = vset.pattern.permute.xlu0 1
    %597 = vperm.xlu0 %596, %v397
    %v598 = vpop.permute.xlu0 %597
    %v600 = vlaneseq
    %v601 = vshrl.u32 %v600, 7
    %v602 = vsub.s32 1, %v601
    %v603 = vrot.slane %v476, %v602
    %v604 = vadd.f32 %v594, %v603
    %v605 = vadd.f32 %v598, %v603
    %vm606 = vcmp.gt.f32.partialorder %v604, 0.0
    %vm607 = vcmp.gt.f32.partialorder %v605, 0.0
    %v608 = vmul.f32 %v604, 0.2
    %v609 = vmul.f32 %v605, 0.2
    %v610 = vsel %vm606, %v604, %v608
    %v611 = vsel %vm607, %v605, %v609
    %v612 = vadd.f32 %v610, %v489
    %v613 = vadd.f32 %v611, %v490
    %v614 = vsel %vm491, %v612, -inf
    %615 = vmax.xlane.f32.xlu0 %v614
    %v616 = vpop.xlane.xlu0 %615
    %v617 = vsel %vm491, %v613, -inf
    %618 = vmax.xlane.f32.xlu0 %v617
    %v619 = vpop.xlane.xlu0 %618
    %v620 = vsub.f32 %v612, %v616
    %v621 = vsub.f32 %v613, %v619
    %v622 = vmul.f32 %v620, 1.442695
    %v623 = vpow.pop %v622
    %v624 = vmul.f32 %v621, 1.442695
    %v625 = vpow.pop %v624
    %v626 = vsel %vm491, %v623, 0.0
    %627 = vadd.xlane.f32.xlu0 %v626
    %v628 = vpop.xlane.xlu0 %627
    %v629 = vsel %vm491, %v625, 0.0
    %630 = vadd.xlane.f32.xlu0 %v629
    %v631 = vpop.xlane.xlu0 %630
    %v632 = vrcp.pop %v628
    %v633 = vrcp.pop %v631
    %v634 = vmul.f32 %v632, %v494
    %v635 = vmul.f32 %v633, %v497
    %v636 = vpack.c.bf16 %v625, %v623
    %638 = vrot.lane.b32.xlu0 %v545, 120
    %v639 = vpop.permute.xlu0 %638
    %v642 = vsel %vm491, %v636, 0
    %644 = vmatprep.subr.bf16.mxu0 0
    %645 = vmatpush1.bf16.msra.mxu0 %v639
    %646 = vmatprep.subr.bf16.mxu0 0
    %647 = vmatpush1.bf16.msra.mxu0 0
    %648 = vmatprep.subr.bf16.mxu0 0
    %649 = vmatpush1.bf16.msra.mxu0 0
    %650 = vmatprep.subr.bf16.mxu0 0
    %651 = vmatpush1.bf16.msra.mxu0 0
    %652 = vmatprep.subr.bf16.mxu0 0
    %653 = vmatpush1.bf16.msra.mxu0 0
    %654 = vmatprep.subr.bf16.mxu0 0
    %655 = vmatpush1.bf16.msra.mxu0 0
    %656 = vmatprep.subr.bf16.mxu0 0
    %657 = vmatpush1.bf16.msra.mxu0 0
    %658 = vmatprep.subr.bf16.mxu0 0
    %659 = vmatpush1.bf16.msra.mxu0 0
    %660 = vmatprep.subr.bf16.mxu0 0
    %661 = vmatpush1.bf16.msra.mxu0 0
    %662 = vmatprep.subr.bf16.mxu0 0
    %663 = vmatpush1.bf16.msra.mxu0 0
    %664 = vmatprep.subr.bf16.mxu0 0
    %665 = vmatpush1.bf16.msra.mxu0 0
    %666 = vmatprep.subr.bf16.mxu0 0
    %667 = vmatpush1.bf16.msra.mxu0 0
    %668 = vmatprep.subr.bf16.mxu0 0
    %669 = vmatpush1.bf16.msra.mxu0 0
    %670 = vmatprep.subr.bf16.mxu0 0
    %671 = vmatpush1.bf16.msra.mxu0 0
    %672 = vmatprep.subr.bf16.mxu0 0
    %673 = vmatpush1.bf16.msra.mxu0 0
    %674 = vmatprep.subr.bf16.mxu0 0
    %675 = vmatpush1.bf16.msra.mxu0 0
    %676 = vmatprep.mubr.bf16.mxu0 0
    %677 = vmatmul.mubr.bf16.gmra.mrb[0].mxu0 %v642
    %v678 = vpop.f32.mrb[0].mxu0
    %v679 = vadd.f32 0.0, %v678
    %v680 = vpop.f32.mrb[0].mxu0
    %v681 = vpop.f32.mrb[0].mxu0
    %v682 = vadd.f32 0.0, %v681
    %v683 = vpop.f32.mrb[0].mxu0
    %684 = vdwg.mxu0
    %v685 = vmul.f32 %v679, %v634
    %v686 = vmul.f32 %v682, %v635
    %687 = vset.pattern.permute.xlu0 2
    %688 = vperm.xlu0 %687, %v392
    %v689 = vpop.permute.xlu0 %688
    %691 = vset.pattern.permute.xlu0 2
    %692 = vperm.xlu0 %691, %v397
    %v693 = vpop.permute.xlu0 %692
    %v695 = vlaneseq
    %v696 = vshrl.u32 %v695, 7
    %v697 = vsub.s32 2, %v696
    %v698 = vrot.slane %v476, %v697
    %v699 = vadd.f32 %v689, %v698
    %v700 = vadd.f32 %v693, %v698
    %vm701 = vcmp.gt.f32.partialorder %v699, 0.0
    %vm702 = vcmp.gt.f32.partialorder %v700, 0.0
    %v703 = vmul.f32 %v699, 0.2
    %v704 = vmul.f32 %v700, 0.2
    %v705 = vsel %vm701, %v699, %v703
    %v706 = vsel %vm702, %v700, %v704
    %v707 = vadd.f32 %v705, %v489
    %v708 = vadd.f32 %v706, %v490
    %v709 = vsel %vm491, %v707, -inf
    %710 = vmax.xlane.f32.xlu0 %v709
    %v711 = vpop.xlane.xlu0 %710
    %v712 = vsel %vm491, %v708, -inf
    %713 = vmax.xlane.f32.xlu0 %v712
    %v714 = vpop.xlane.xlu0 %713
    %v715 = vsub.f32 %v707, %v711
    %v716 = vsub.f32 %v708, %v714
    %v717 = vmul.f32 %v715, 1.442695
    %v718 = vpow.pop %v717
    %v719 = vmul.f32 %v716, 1.442695
    %v720 = vpow.pop %v719
    %v721 = vsel %vm491, %v718, 0.0
    %722 = vadd.xlane.f32.xlu0 %v721
    %v723 = vpop.xlane.xlu0 %722
    %v724 = vsel %vm491, %v720, 0.0
    %725 = vadd.xlane.f32.xlu0 %v724
    %v726 = vpop.xlane.xlu0 %725
    %v727 = vrcp.pop %v723
    %v728 = vrcp.pop %v726
    %v729 = vmul.f32 %v727, %v494
    %v730 = vmul.f32 %v728, %v497
    %v731 = vpack.c.bf16 %v720, %v718
    %732 = vrot.lane.b32.xlu0 %v545, 112
    %v733 = vpop.permute.xlu0 %732
    %v736 = vsel %vm491, %v731, 0
    %738 = vmatprep.subr.bf16.mxu0 0
    %739 = vmatpush1.bf16.msra.mxu0 %v733
    %740 = vmatprep.subr.bf16.mxu0 0
    %741 = vmatpush1.bf16.msra.mxu0 0
    %742 = vmatprep.subr.bf16.mxu0 0
    %743 = vmatpush1.bf16.msra.mxu0 0
    %744 = vmatprep.subr.bf16.mxu0 0
    %745 = vmatpush1.bf16.msra.mxu0 0
    %746 = vmatprep.subr.bf16.mxu0 0
    %747 = vmatpush1.bf16.msra.mxu0 0
    %748 = vmatprep.subr.bf16.mxu0 0
    %749 = vmatpush1.bf16.msra.mxu0 0
    %750 = vmatprep.subr.bf16.mxu0 0
    %751 = vmatpush1.bf16.msra.mxu0 0
    %752 = vmatprep.subr.bf16.mxu0 0
    %753 = vmatpush1.bf16.msra.mxu0 0
    %754 = vmatprep.subr.bf16.mxu0 0
    %755 = vmatpush1.bf16.msra.mxu0 0
    %756 = vmatprep.subr.bf16.mxu0 0
    %757 = vmatpush1.bf16.msra.mxu0 0
    %758 = vmatprep.subr.bf16.mxu0 0
    %759 = vmatpush1.bf16.msra.mxu0 0
    %760 = vmatprep.subr.bf16.mxu0 0
    %761 = vmatpush1.bf16.msra.mxu0 0
    %762 = vmatprep.subr.bf16.mxu0 0
    %763 = vmatpush1.bf16.msra.mxu0 0
    %764 = vmatprep.subr.bf16.mxu0 0
    %765 = vmatpush1.bf16.msra.mxu0 0
    %766 = vmatprep.subr.bf16.mxu0 0
    %767 = vmatpush1.bf16.msra.mxu0 0
    %768 = vmatprep.subr.bf16.mxu0 0
    %769 = vmatpush1.bf16.msra.mxu0 0
    %770 = vmatprep.mubr.bf16.mxu0 0
    %771 = vmatmul.mubr.bf16.gmra.mrb[0].mxu0 %v736
    %v772 = vpop.f32.mrb[0].mxu0
    %v773 = vadd.f32 0.0, %v772
    %v774 = vpop.f32.mrb[0].mxu0
    %v775 = vpop.f32.mrb[0].mxu0
    %v776 = vadd.f32 0.0, %v775
    %v777 = vpop.f32.mrb[0].mxu0
    %778 = vdwg.mxu0
    %v779 = vmul.f32 %v773, %v729
    %v780 = vmul.f32 %v776, %v730
    %781 = vset.pattern.permute.xlu0 3
    %782 = vperm.xlu0 %781, %v392
    %v783 = vpop.permute.xlu0 %782
    %785 = vset.pattern.permute.xlu0 3
    %786 = vperm.xlu0 %785, %v397
    %v787 = vpop.permute.xlu0 %786
    %v789 = vlaneseq
    %v790 = vshrl.u32 %v789, 7
    %v791 = vsub.s32 3, %v790
    %v792 = vrot.slane %v476, %v791
    %v793 = vadd.f32 %v783, %v792
    %v794 = vadd.f32 %v787, %v792
    %vm795 = vcmp.gt.f32.partialorder %v793, 0.0
    %vm796 = vcmp.gt.f32.partialorder %v794, 0.0
    %v797 = vmul.f32 %v793, 0.2
    %v798 = vmul.f32 %v794, 0.2
    %v799 = vsel %vm795, %v793, %v797
    %v800 = vsel %vm796, %v794, %v798
    %v801 = vadd.f32 %v799, %v489
    %v802 = vadd.f32 %v800, %v490
    %v803 = vsel %vm491, %v801, -inf
    %804 = vmax.xlane.f32.xlu0 %v803
    %v805 = vpop.xlane.xlu0 %804
    %v806 = vsel %vm491, %v802, -inf
    %807 = vmax.xlane.f32.xlu0 %v806
    %v808 = vpop.xlane.xlu0 %807
    %v809 = vsub.f32 %v801, %v805
    %v810 = vsub.f32 %v802, %v808
    %v811 = vmul.f32 %v809, 1.442695
    %v812 = vpow.pop %v811
    %v813 = vmul.f32 %v810, 1.442695
    %v814 = vpow.pop %v813
    %v815 = vsel %vm491, %v812, 0.0
    %816 = vadd.xlane.f32.xlu0 %v815
    %v817 = vpop.xlane.xlu0 %816
    %v818 = vsel %vm491, %v814, 0.0
    %819 = vadd.xlane.f32.xlu0 %v818
    %v820 = vpop.xlane.xlu0 %819
    %v821 = vrcp.pop %v817
    %v822 = vrcp.pop %v820
    %v823 = vmul.f32 %v821, %v494
    %v824 = vmul.f32 %v822, %v497
    %v825 = vpack.c.bf16 %v814, %v812
    %826 = vrot.lane.b32.xlu0 %v545, 104
    %v827 = vpop.permute.xlu0 %826
    %v830 = vsel %vm491, %v825, 0
    %832 = vmatprep.subr.bf16.mxu0 0
    %833 = vmatpush1.bf16.msra.mxu0 %v827
    %834 = vmatprep.subr.bf16.mxu0 0
    %835 = vmatpush1.bf16.msra.mxu0 0
    %836 = vmatprep.subr.bf16.mxu0 0
    %837 = vmatpush1.bf16.msra.mxu0 0
    %838 = vmatprep.subr.bf16.mxu0 0
    %839 = vmatpush1.bf16.msra.mxu0 0
    %840 = vmatprep.subr.bf16.mxu0 0
    %841 = vmatpush1.bf16.msra.mxu0 0
    %842 = vmatprep.subr.bf16.mxu0 0
    %843 = vmatpush1.bf16.msra.mxu0 0
    %844 = vmatprep.subr.bf16.mxu0 0
    %845 = vmatpush1.bf16.msra.mxu0 0
    %846 = vmatprep.subr.bf16.mxu0 0
    %847 = vmatpush1.bf16.msra.mxu0 0
    %848 = vmatprep.subr.bf16.mxu0 0
    %849 = vmatpush1.bf16.msra.mxu0 0
    %850 = vmatprep.subr.bf16.mxu0 0
    %851 = vmatpush1.bf16.msra.mxu0 0
    %852 = vmatprep.subr.bf16.mxu0 0
    %853 = vmatpush1.bf16.msra.mxu0 0
    %854 = vmatprep.subr.bf16.mxu0 0
    %855 = vmatpush1.bf16.msra.mxu0 0
    %856 = vmatprep.subr.bf16.mxu0 0
    %857 = vmatpush1.bf16.msra.mxu0 0
    %858 = vmatprep.subr.bf16.mxu0 0
    %859 = vmatpush1.bf16.msra.mxu0 0
    %860 = vmatprep.subr.bf16.mxu0 0
    %861 = vmatpush1.bf16.msra.mxu0 0
    %862 = vmatprep.subr.bf16.mxu0 0
    %863 = vmatpush1.bf16.msra.mxu0 0
    %864 = vmatprep.mubr.bf16.mxu0 0
    %865 = vmatmul.mubr.bf16.gmra.mrb[0].mxu0 %v830
    %v866 = vpop.f32.mrb[0].mxu0
    %v867 = vadd.f32 0.0, %v866
    %v868 = vpop.f32.mrb[0].mxu0
    %v869 = vpop.f32.mrb[0].mxu0
    %v870 = vadd.f32 0.0, %v869
    %v871 = vpop.f32.mrb[0].mxu0
    %872 = vdwg.mxu0
    %v873 = vmul.f32 %v867, %v823
    %v874 = vmul.f32 %v870, %v824
    %877 = vrot.lane.b32.xlu0 %v685, 8
    %v878 = vpop.permute.xlu0 %877
    %879 = vrot.lane.b32.xlu0 %v686, 8
    %v880 = vpop.permute.xlu0 %879
    %885 = vrot.lane.b32.xlu0 %v779, 16
    %v886 = vpop.permute.xlu0 %885
    %887 = vrot.lane.b32.xlu0 %v780, 16
    %v888 = vpop.permute.xlu0 %887
    %893 = vrot.lane.b32.xlu0 %v873, 24
    %v894 = vpop.permute.xlu0 %893
    %895 = vrot.lane.b32.xlu0 %v874, 24
    %v896 = vpop.permute.xlu0 %895
    %vm899 = vcmask 64512
    %v900 = vsel %vm899, %v590, %v878
    %v901 = vsel %vm899, %v591, %v880
    %v902 = vsel %vm491, %v900, %v886
    %v903 = vsel %vm491, %v901, %v888
    %vm904 = vcmask 195584
    %v905 = vsel %vm904, %v902, %v894
    %v906 = vsel %vm904, %v903, %v896
    %v908 = vlaneseq
    %v909 = vshrl.u32 %v908, 7
    %v910 = vsub.s32 0, %v909
    %v911 = vrot.slane %v153, %v910
    %v913 = vadd.f32 %v905, %v911
    %v914 = vadd.f32 %v906, %v911
    %vm915 = vcmp.gt.f32.partialorder %v913, 0.0
    %vm916 = vcmp.gt.f32.partialorder %v914, 0.0
    %v917 = vmul.f32 %v913, 0.01
    %v918 = vmul.f32 %v914, 0.01
    %v919 = vsel %vm915, %v913, %v917
    %v920 = vsel %vm916, %v914, %v918
    %921 = vst.msk [vmem:[#allocation16] sm:$0xff] %vm156, %v919
    %922 = vst.msk [vmem:[#allocation16 + $0x8] sm:$0xff] %vm156, %v920
    // Predicated region
    $region66: #{tpu_custom_call.1} parent=1 // pred_check
      _
    $region67: #{tpu_custom_call.1} parent=1 // pred_check_branch
      %924 = sbr.rel (0) target = $region69
    $region68: #{tpu_custom_call.1} parent=1 // pred_region
      %s926 = ssub.s32 256, 256
      %927 = vsyncadd [#allocation4], %s926
      %s928 = sshll.u32 [#allocation16], 4
      %s929 = int_to_ptr.vmem [resolvable:$true] %s928
      %934 = dma.vmem_to_hbm [thread:$0]  %s929, 256, %s8, [#allocation4], 128, 128, 8
    $region69: #{tpu_custom_call.1} parent=1 // pred_fallthru
      _
    // Predicated region
    $region70: #{tpu_custom_call.1} parent=1 // pred_check
      _
    $region71: #{tpu_custom_call.1} parent=1 // pred_check_branch
      %936 = sbr.rel (0) target = $region73
    $region72: #{tpu_custom_call.1} parent=1 // pred_region
      %937 = dma.done [#allocation4], 256
    $region73: #{tpu_custom_call.1} parent=1 // pred_fallthru
      _
    %938 = vsyncpa [#allocation3], 1
    %939 = vsyncpa [#allocation6], 1
    %940 = vsyncpa [#allocation9], 1
    %941 = vsyncpa [#allocation12], 1
    %942 = vsyncpa [#allocation15], 1
    %943 = vsyncpa [#allocation4], 1

</llo_original>
